<compile_context>
chip_gen: v6e
topology: v6e:2x2x1
jax: 0.10.0
libtpu: 0.0.40
codegen_flags: <defaults>
</compile_context>

<pallas_src>
import functools

import jax
import jax.numpy as jnp
from jax import lax
from jax.experimental import pallas as pl
from jax.experimental.pallas import tpu as pltpu

LANES = 128
ACC_ROWS = 32            # accumulator height: 4 vregs/output -> 4-way ILP in the add chain
MAX_BLOCK_ROWS = 4096    # 4096 x 128 f32 = 2 MiB per input tile per buffer
SUBLANE_MULT = 32        # block-row multiple valid for f32/bf16/int8 inputs; == ACC_ROWS


def _chip_config():
    """Return (num_partials, vmem_limit_bytes) for the local TPU generation.

    v7x: 2 TensorCores/chip (shard the reduction axis across them) but only
    64 MiB physical VMEM per TC (keep the scoped limit conservative).
    v5e/v6e: single TensorCore, 128 MiB VMEM (raise the scoped limit).
    Falls back to the safe single-core / 44 MiB config if detection fails.
    """
    kind = ""
    try:
        kind = jax.devices()[0].device_kind.lower()
    except Exception:  # pragma: no cover - defensive
        pass
    vmem_capacity = None
    try:
        vmem_capacity = pltpu.get_tpu_info().vmem_capacity_bytes
    except Exception:  # pragma: no cover - defensive
        pass

    is_v7 = ("v7" in kind) or (
        vmem_capacity is not None and vmem_capacity <= 96 * 1024 * 1024)
    if is_v7:
        return 2, 44 * 1024 * 1024
    if "v5" in kind or "v6" in kind or (
            vmem_capacity is not None and vmem_capacity >= 120 * 1024 * 1024):
        return 1, 64 * 1024 * 1024
    # Unknown chip: safe defaults (fits any generation's VMEM).
    return 1, 44 * 1024 * 1024


def _mask_l1_kernel(pred_ref, gt_ref, mask_ref, num_ref, den_ref, *,
                    steps, block_rows, rows, needs_mask):
    c = pl.program_id(0)   # partial / TensorCore index ("parallel")
    i = pl.program_id(1)   # reduction step             ("arbitrary")

    @pl.when(i == 0)
    def _():
        num_ref[...] = jnp.zeros_like(num_ref)
        den_ref[...] = jnp.zeros_like(den_ref)

    # Load in native dtype, compute in f32 (v5e VPU has no bf16 math).
    p = pred_ref[...].astype(jnp.float32)
    g = gt_ref[...].astype(jnp.float32)
    m = mask_ref[...].astype(jnp.float32)
    absdiff = jnp.abs(p - g)

    def accumulate(a, mm):
        # (block_rows, 128) -> (block_rows//32, 32, 128) is a row-major,
        # sublane-tile-aligned regroup (32 is a multiple of the 8-row tile),
        # so the sum(axis=0) lowers to pure vreg adds with no VMEM copy.
        # Four independent accumulator vregs per output keep the dependent
        # add chain short enough to stay hidden under the DMA on v7x too.
        num_ref[...] += (a * mm).reshape(
            block_rows // ACC_ROWS, ACC_ROWS, LANES).sum(axis=0)
        den_ref[...] += mm.reshape(
            block_rows // ACC_ROWS, ACC_ROWS, LANES).sum(axis=0)

    if needs_mask:
        # Validity masking uses the UNCLAMPED logical block index, so rows
        # beyond the true extent (partial last block) and fully-out-of-range
        # steps whose DMA the index_map clamped contribute exactly zero, even
        # if the untransferred VMEM rows contain NaN garbage.  Only those
        # blocks pay for the iota/compare/select; full blocks fast-path.
        logical_block = c * steps + i
        is_full = (logical_block + 1) * block_rows <= rows

        @pl.when(is_full)
        def _():
            accumulate(absdiff, m)

        @pl.when(jnp.logical_not(is_full))
        def _():
            row = logical_block * block_rows + lax.broadcasted_iota(
                jnp.int32, (block_rows, LANES), 0)
            valid = row < rows
            accumulate(jnp.where(valid, absdiff, 0.0),
                       jnp.where(valid, m, 0.0))
    else:
        accumulate(absdiff, m)


def mask_l1_loss(pred, gt, mask, eps=1e-6):
    """Masked L1 loss, reduced to a scalar, matching MaskL1Loss.forward."""
    assert pred.shape == gt.shape == mask.shape
    n = pred.size

    pred_f = pred.reshape(-1)
    gt_f = gt.reshape(-1)
    mask_f = mask.reshape(-1)

    n_main = (n // LANES) * LANES

    # Sub-128-element ragged tail (rare): plain JAX, folded into the partials.
    if n_main < n:
        tp = pred_f[n_main:].astype(jnp.float32)
        tg = gt_f[n_main:].astype(jnp.float32)
        tm = mask_f[n_main:].astype(jnp.float32)
        tail_num = jnp.sum(jnp.abs(tp - tg) * tm)
        tail_den = jnp.sum(tm)
    else:
        tail_num = jnp.float32(0.0)
        tail_den = jnp.float32(0.0)

    if n_main == 0:
        # Fewer than 128 elements total: nothing for the kernel to do.
        return tail_num / (tail_den + eps)

    rows = n_main // LANES
    if n_main == n:
        pred2 = pred_f.reshape(rows, LANES)
        gt2 = gt_f.reshape(rows, LANES)
        mask2 = mask_f.reshape(rows, LANES)
    else:
        pred2 = pred_f[:n_main].reshape(rows, LANES)
        gt2 = gt_f[:n_main].reshape(rows, LANES)
        mask2 = mask_f[:n_main].reshape(rows, LANES)

    num_partials, vmem_limit = _chip_config()

    block_rows = min(
        MAX_BLOCK_ROWS,
        ((rows + SUBLANE_MULT - 1) // SUBLANE_MULT) * SUBLANE_MULT)
    rows_blocks = (rows + block_rows - 1) // block_rows
    # Never use more partials than there are blocks (avoids fully-redundant
    # clamped work for tiny inputs on v7x).
    num_partials = min(num_partials, rows_blocks)
    steps = (rows_blocks + num_partials - 1) // num_partials
    grid = (num_partials, steps)
    needs_mask = (num_partials * steps * block_rows != rows)

    def in_index(c, i):
        # Clamp so the DMA never targets a fully out-of-bounds block; the
        # in-kernel validity mask (unclamped index) zeroes any re-read data,
        # so nothing is double counted.
        return (jnp.minimum(c * steps + i, rows_blocks - 1), 0)

    in_spec = pl.BlockSpec((block_rows, LANES), in_index)
    out_spec = pl.BlockSpec((ACC_ROWS, LANES), lambda c, i: (c, 0))

    kernel = functools.partial(
        _mask_l1_kernel,
        steps=steps, block_rows=block_rows, rows=rows, needs_mask=needs_mask)

    out_rows = num_partials * ACC_ROWS
    bytes_accessed = int(pred2.nbytes + gt2.nbytes + mask2.nbytes
                         + 2 * out_rows * LANES * 4)

    num_out, den_out = pl.pallas_call(
        kernel,
        out_shape=(
            jax.ShapeDtypeStruct((out_rows, LANES), jnp.float32),
            jax.ShapeDtypeStruct((out_rows, LANES), jnp.float32),
        ),
        grid_spec=pltpu.PrefetchScalarGridSpec(
            num_scalar_prefetch=0,
            grid=grid,
            in_specs=[in_spec, in_spec, in_spec],
            out_specs=[out_spec, out_spec],
        ),
        compiler_params=pltpu.CompilerParams(
            dimension_semantics=("parallel", "arbitrary"),
            vmem_limit_bytes=vmem_limit,
        ),
        cost_estimate=pl.CostEstimate(
            flops=5 * n_main,
            transcendentals=0,
            bytes_accessed=bytes_accessed),
    )(pred2, gt2, mask2)

    num_total = jnp.sum(num_out) + tail_num
    den_total = jnp.sum(den_out) + tail_den
    return num_total / (den_total + eps)


if __name__ == "__main__":
    key = jax.random.PRNGKey(0)
    k1, k2, k3, k4, k5, k6 = jax.random.split(key, 6)

    # Small shapes consistent with DB-loss usage: pred/gt/mask are (N, H, W).
    N, H, W = 2, 16, 16
    pred = jax.random.uniform(k1, (N, H, W), dtype=jnp.float32)
    gt = jax.random.uniform(k2, (N, H, W), dtype=jnp.float32)
    mask = (jax.random.uniform(k3, (N, H, W)) > 0.5).astype(jnp.float32)

    loss = jax.block_until_ready(mask_l1_loss(pred, gt, mask, eps=1e-6))
    ref = jnp.sum(jnp.abs(pred - gt) * mask) / (jnp.sum(mask) + 1e-6)
    assert jnp.allclose(loss, ref, rtol=1e-5, atol=1e-6), (loss, ref)

    # Ragged shape: exercises the masked last block + sub-128 tail path.
    pred2 = jax.random.uniform(k4, (3, 7, 19), dtype=jnp.float32)
    gt2 = jax.random.uniform(k5, (3, 7, 19), dtype=jnp.float32)
    mask2 = (jax.random.uniform(k6, (3, 7, 19)) > 0.5).astype(jnp.float32)

    loss2 = jax.block_until_ready(mask_l1_loss(pred2, gt2, mask2, eps=1e-6))
    ref2 = jnp.sum(jnp.abs(pred2 - gt2) * mask2) / (jnp.sum(mask2) + 1e-6)
    assert jnp.allclose(loss2, ref2, rtol=1e-5, atol=1e-6), (loss2, ref2)

    print("KERNEL_OK")
</pallas_src>

<mosaic_0001>
module attributes {stable_mosaic.version = 11 : i64} {
  func.func @_mask_l1_kernel(%arg0: i32, %arg1: i32, %arg2: memref<32x128xf32, #tpu.memory_space<vmem>>, %arg3: memref<32x128xf32, #tpu.memory_space<vmem>>, %arg4: memref<32x128xf32, #tpu.memory_space<vmem>>, %arg5: memref<32x128xf32, #tpu.memory_space<vmem>>, %arg6: memref<32x128xf32, #tpu.memory_space<vmem>>) attributes {dimension_semantics = [#tpu.dimension_semantics<parallel>, #tpu.dimension_semantics<arbitrary>], iteration_bounds = array<i64: 1, 1>, scalar_prefetch = 0 : i64, scratch_operands = 0 : i64, tpu.core_type = #tpu.core_type<tc>, window_params = [{transform_indices = @transform_0, window_bounds = array<i64: 32, 128>}, {transform_indices = @transform_1, window_bounds = array<i64: 32, 128>}, {transform_indices = @transform_2, window_bounds = array<i64: 32, 128>}, {transform_indices = @transform_3, window_bounds = array<i64: 32, 128>}, {transform_indices = @transform_4, window_bounds = array<i64: 32, 128>}]} {
    %c0_i32 = arith.constant 0 : i32
    %0 = arith.cmpi eq, %arg1, %c0_i32 : i32
    %1 = arith.extui %0 : i1 to i32
    %c0_i32_0 = arith.constant 0 : i32
    %2 = arith.cmpi ne, %1, %c0_i32_0 : i32
    scf.if %2 {
      %cst = arith.constant 0.000000e+00 : f32
      %18 = vector.broadcast %cst : f32 to vector<32x128xf32>
      %c0_9 = arith.constant 0 : index
      %c0_10 = arith.constant 0 : index
      %19 = vector.load %arg5[%c0_9, %c0_10] : memref<32x128xf32, #tpu.memory_space<vmem>>, vector<32x128xf32>
      tpu.vector_store %arg5[%c0_9, %c0_10], %18 {strides = array<i32>} : memref<32x128xf32, #tpu.memory_space<vmem>>, vector<32x128xf32>,
      %cst_11 = arith.constant 0.000000e+00 : f32
      %20 = vector.broadcast %cst_11 : f32 to vector<32x128xf32>
      %c0_12 = arith.constant 0 : index
      %c0_13 = arith.constant 0 : index
      %21 = vector.load %arg6[%c0_12, %c0_13] : memref<32x128xf32, #tpu.memory_space<vmem>>, vector<32x128xf32>
      tpu.vector_store %arg6[%c0_12, %c0_13], %20 {strides = array<i32>} : memref<32x128xf32, #tpu.memory_space<vmem>>, vector<32x128xf32>,
    } else {
    }
    %c0 = arith.constant 0 : index
    %c0_1 = arith.constant 0 : index
    %3 = vector.load %arg2[%c0, %c0_1] : memref<32x128xf32, #tpu.memory_space<vmem>>, vector<32x128xf32>
    %c0_2 = arith.constant 0 : index
    %c0_3 = arith.constant 0 : index
    %4 = vector.load %arg3[%c0_2, %c0_3] : memref<32x128xf32, #tpu.memory_space<vmem>>, vector<32x128xf32>
    %c0_4 = arith.constant 0 : index
    %c0_5 = arith.constant 0 : index
    %5 = vector.load %arg4[%c0_4, %c0_5] : memref<32x128xf32, #tpu.memory_space<vmem>>, vector<32x128xf32>
    %6 = arith.subf %3, %4 : vector<32x128xf32>
    %7 = math.absf %6 : vector<32x128xf32>
    %c1_i32 = arith.constant 1 : i32
    %8 = arith.muli %arg0, %c1_i32 : i32
    %9 = arith.addi %8, %arg1 : i32
    %c1_i32_6 = arith.constant 1 : i32
    %10 = arith.addi %9, %c1_i32_6 : i32
    %c32_i32 = arith.constant 32 : i32
    %11 = arith.muli %10, %c32_i32 : i32
    %c4_i32 = arith.constant 4 : i32
    %12 = arith.cmpi sle, %11, %c4_i32 : i32
    %13 = arith.extui %12 : i1 to i32
    %c0_i32_7 = arith.constant 0 : i32
    %14 = arith.cmpi ne, %13, %c0_i32_7 : i32
    scf.if %14 {
      %c0_9 = arith.constant 0 : index
      %c0_10 = arith.constant 0 : index
      %18 = vector.load %arg5[%c0_9, %c0_10] : memref<32x128xf32, #tpu.memory_space<vmem>>, vector<32x128xf32>
      %19 = arith.mulf %7, %5 : vector<32x128xf32>
      %20 = vector.shape_cast %19 : vector<32x128xf32> to vector<1x32x128xf32>
      %cst = arith.constant dense<0.000000e+00> : vector<32x128xf32>
      %21 = vector.multi_reduction <add>, %20, %cst [0] : vector<1x32x128xf32> to vector<32x128xf32>
      %22 = arith.addf %18, %21 : vector<32x128xf32>
      %c0_11 = arith.constant 0 : index
      %c0_12 = arith.constant 0 : index
      %23 = vector.load %arg5[%c0_11, %c0_12] : memref<32x128xf32, #tpu.memory_space<vmem>>, vector<32x128xf32>
      tpu.vector_store %arg5[%c0_11, %c0_12], %22 {strides = array<i32>} : memref<32x128xf32, #tpu.memory_space<vmem>>, vector<32x128xf32>,
      %c0_13 = arith.constant 0 : index
      %c0_14 = arith.constant 0 : index
      %24 = vector.load %arg6[%c0_13, %c0_14] : memref<32x128xf32, #tpu.memory_space<vmem>>, vector<32x128xf32>
      %25 = vector.shape_cast %5 : vector<32x128xf32> to vector<1x32x128xf32>
      %cst_15 = arith.constant dense<0.000000e+00> : vector<32x128xf32>
      %26 = vector.multi_reduction <add>, %25, %cst_15 [0] : vector<1x32x128xf32> to vector<32x128xf32>
      %27 = arith.addf %24, %26 : vector<32x128xf32>
      %c0_16 = arith.constant 0 : index
      %c0_17 = arith.constant 0 : index
      %28 = vector.load %arg6[%c0_16, %c0_17] : memref<32x128xf32, #tpu.memory_space<vmem>>, vector<32x128xf32>
      tpu.vector_store %arg6[%c0_16, %c0_17], %27 {strides = array<i32>} : memref<32x128xf32, #tpu.memory_space<vmem>>, vector<32x128xf32>,
    } else {
    }
    %true = arith.constant true
    %15 = arith.xori %12, %true : i1
    %16 = arith.extui %15 : i1 to i32
    %c0_i32_8 = arith.constant 0 : i32
    %17 = arith.cmpi ne, %16, %c0_i32_8 : i32
    scf.if %17 {
      %c32_i32_9 = arith.constant 32 : i32
      %18 = arith.muli %9, %c32_i32_9 : i32
      %19 = tpu.iota {dimensions = array<i32: 0>} : vector<32x128xi32>
      %20 = vector.broadcast %18 : i32 to vector<32x128xi32>
      %21 = arith.addi %20, %19 : vector<32x128xi32>
      %c4_i32_10 = arith.constant 4 : i32
      %22 = vector.broadcast %c4_i32_10 : i32 to vector<32x128xi32>
      %23 = arith.cmpi slt, %21, %22 : vector<32x128xi32>
      %cst = arith.constant 0.000000e+00 : f32
      %24 = vector.broadcast %cst : f32 to vector<32x128xf32>
      %25 = arith.select %23, %7, %24 : vector<32x128xi1>, vector<32x128xf32>
      %cst_11 = arith.constant 0.000000e+00 : f32
      %26 = vector.broadcast %cst_11 : f32 to vector<32x128xf32>
      %27 = arith.select %23, %5, %26 : vector<32x128xi1>, vector<32x128xf32>
      %c0_12 = arith.constant 0 : index
      %c0_13 = arith.constant 0 : index
      %28 = vector.load %arg5[%c0_12, %c0_13] : memref<32x128xf32, #tpu.memory_space<vmem>>, vector<32x128xf32>
      %29 = arith.mulf %25, %27 : vector<32x128xf32>
      %30 = vector.shape_cast %29 : vector<32x128xf32> to vector<1x32x128xf32>
      %cst_14 = arith.constant dense<0.000000e+00> : vector<32x128xf32>
      %31 = vector.multi_reduction <add>, %30, %cst_14 [0] : vector<1x32x128xf32> to vector<32x128xf32>
      %32 = arith.addf %28, %31 : vector<32x128xf32>
      %c0_15 = arith.constant 0 : index
      %c0_16 = arith.constant 0 : index
      %33 = vector.load %arg5[%c0_15, %c0_16] : memref<32x128xf32, #tpu.memory_space<vmem>>, vector<32x128xf32>
      tpu.vector_store %arg5[%c0_15, %c0_16], %32 {strides = array<i32>} : memref<32x128xf32, #tpu.memory_space<vmem>>, vector<32x128xf32>,
      %c0_17 = arith.constant 0 : index
      %c0_18 = arith.constant 0 : index
      %34 = vector.load %arg6[%c0_17, %c0_18] : memref<32x128xf32, #tpu.memory_space<vmem>>, vector<32x128xf32>
      %35 = vector.shape_cast %27 : vector<32x128xf32> to vector<1x32x128xf32>
      %cst_19 = arith.constant dense<0.000000e+00> : vector<32x128xf32>
      %36 = vector.multi_reduction <add>, %35, %cst_19 [0] : vector<1x32x128xf32> to vector<32x128xf32>
      %37 = arith.addf %34, %36 : vector<32x128xf32>
      %c0_20 = arith.constant 0 : index
      %c0_21 = arith.constant 0 : index
      %38 = vector.load %arg6[%c0_20, %c0_21] : memref<32x128xf32, #tpu.memory_space<vmem>>, vector<32x128xf32>
      tpu.vector_store %arg6[%c0_20, %c0_21], %37 {strides = array<i32>} : memref<32x128xf32, #tpu.memory_space<vmem>>, vector<32x128xf32>,
    } else {
    }
    return
  }
  func.func @transform_0(%arg0: i32, %arg1: i32) -> (i32, i32) {
    %c1_i32 = arith.constant 1 : i32
    %0 = arith.muli %arg0, %c1_i32 : i32
    %1 = arith.addi %0, %arg1 : i32
    %c0_i32 = arith.constant 0 : i32
    %2 = arith.minsi %1, %c0_i32 : i32
    %c0_i32_0 = arith.constant 0 : i32
    %c0_i32_1 = arith.constant 0 : i32
    return %2, %c0_i32_0 : i32, i32
  }
  func.func @transform_1(%arg0: i32, %arg1: i32) -> (i32, i32) {
    %c1_i32 = arith.constant 1 : i32
    %0 = arith.muli %arg0, %c1_i32 : i32
    %1 = arith.addi %0, %arg1 : i32
    %c0_i32 = arith.constant 0 : i32
    %2 = arith.minsi %1, %c0_i32 : i32
    %c0_i32_0 = arith.constant 0 : i32
    %c0_i32_1 = arith.constant 0 : i32
    return %2, %c0_i32_0 : i32, i32
  }
  func.func @transform_2(%arg0: i32, %arg1: i32) -> (i32, i32) {
    %c1_i32 = arith.constant 1 : i32
    %0 = arith.muli %arg0, %c1_i32 : i32
    %1 = arith.addi %0, %arg1 : i32
    %c0_i32 = arith.constant 0 : i32
    %2 = arith.minsi %1, %c0_i32 : i32
    %c0_i32_0 = arith.constant 0 : i32
    %c0_i32_1 = arith.constant 0 : i32
    return %2, %c0_i32_0 : i32, i32
  }
  func.func @transform_3(%arg0: i32, %arg1: i32) -> (i32, i32) {
    %c0_i32 = arith.constant 0 : i32
    %c0_i32_0 = arith.constant 0 : i32
    return %arg0, %c0_i32 : i32, i32
  }
  func.func @transform_4(%arg0: i32, %arg1: i32) -> (i32, i32) {
    %c0_i32 = arith.constant 0 : i32
    %c0_i32_0 = arith.constant 0 : i32
    return %arg0, %c0_i32 : i32, i32
  }
}

</mosaic_0001>

<llo_original>
// kernel: tpu_custom_call.1
$region0: #{tpu_custom_call.1}
  #allocation0 [shape = 'u32[]', space=smem, size = 0x4, offset = 0x4, fixed_abs, tag = 'smem constant byte address 0x4 - core index']
  #allocation1 [shape = 'u32[144,128]{1,0:T(1,128)}', space=vmem, size = 0x12000, scoped, tag = 'internal scratch']
  %s0 = inlined_call_operand.hbm [shape: f32[4,128], index: 0, kind: input, shape index: {}]
  %s1 = inlined_call_operand.hbm [shape: f32[4,128], index: 1, kind: input, shape index: {}]
  %s2 = inlined_call_operand.hbm [shape: f32[4,128], index: 2, kind: input, shape index: {}]
  %s3 = inlined_call_operand.hbm [shape: f32[32,128], index: 3, kind: output, shape index: {0}]
  %s4 = inlined_call_operand.hbm [shape: f32[32,128], index: 4, kind: output, shape index: {1}]
  %5 = xla_tuple %s3, %s4
  %s6 = sld [smem:[#allocation0]]
  $region54: #{tpu_custom_call.1} parent=0
    _
  %s8 = ssub.s32 1, %s6
  %s9 = scalar_select 0, %s8, %s6
  $region1: #{tpu_custom_call.1} parent=0
    #allocation2 [shape = 'u8[16384]{0}', space=vmem, size = 0x4000, scoped, tag = 'input window, operand 0, single buffered']
    #allocation3 [shape = 's32[1]{0}', space=sflag, size = 0x4, scoped, tag = 'scoped memory for tpu_custom_call.1']
    #allocation4 [shape = 's32[1]{0}', space=sflag, size = 0x4, scoped, tag = 'scoped memory for tpu_custom_call.1']
    #allocation5 [shape = 'u8[16384]{0}', space=vmem, size = 0x4000, scoped, tag = 'input window, operand 1, single buffered']
    #allocation6 [shape = 's32[1]{0}', space=sflag, size = 0x4, scoped, tag = 'scoped memory for tpu_custom_call.1']
    #allocation7 [shape = 'u8[16384]{0}', space=vmem, size = 0x4000, scoped, tag = 'input window, operand 2, single buffered']
    #allocation8 [shape = 'u8[16384]{0}', space=vmem, size = 0x4000, scoped, tag = 'output window, operand 0, single buffered']
    #allocation9 [shape = 'u8[16384]{0}', space=vmem, size = 0x4000, scoped, tag = 'output window, operand 1, single buffered']
    #allocation10 [shape = 's32[1]{0}', space=sflag, size = 0x4, scoped, tag = 'scoped memory for tpu_custom_call.1']
    %10 = vsyncpa [#allocation3], 0
    %11 = vsyncpa [#allocation6], 0
    %12 = vsyncpa [#allocation4], 0
    %13 = vsyncpa [#allocation10], 0
    // Predicated region
    $region2: #{tpu_custom_call.1} parent=1 // pred_check
      _
    $region3: #{tpu_custom_call.1} parent=1 // pred_check_branch
      %15 = sbr.rel (0) target = $region5
    $region4: #{tpu_custom_call.1} parent=1 // pred_region
      %s16 = sadd.s32 0, 0
      %p17 = scmp.lt.s32.totalorder %s16, 0
      %s18 = scalar_select %p17, %s16, 0
      %s19 = smul.u32 8, %s18
      %s20 = ssub.s32 1, %s19
      %s21 = smul.u32 64, %s20
      %s23 = ssub.s32 512, %s21
      %24 = vsyncadd [#allocation3], %s23
      %p25 = scmp.ne.s32.totalorder 0, %s21
      %s26 = smul.addr %s19, 64
      %s27 = scalar_lea.hbm %s0, %s26
      %s28 = smul.u32 4, %s20
      %s29 = sshll.u32 [#allocation2], 4
      %s30 = int_to_ptr.vmem [resolvable:$true] %s29
      %s31 = sshll.u32 %s28, 4
      %35 = dma.hbm_to_vmem [thread:$0]  (%p25), %s27, %s31, %s30, [#allocation3], 64, 64, 4
    $region5: #{tpu_custom_call.1} parent=1 // pred_fallthru
      _
    // Predicated region
    $region6: #{tpu_custom_call.1} parent=1 // pred_check
      _
    $region7: #{tpu_custom_call.1} parent=1 // pred_check_branch
      %37 = sbr.rel (0) target = $region9
    $region8: #{tpu_custom_call.1} parent=1 // pred_region
      %s38 = sadd.s32 0, 0
      %p39 = scmp.lt.s32.totalorder %s38, 0
      %s40 = scalar_select %p39, %s38, 0
      %s41 = smul.u32 8, %s40
      %s42 = ssub.s32 1, %s41
      %s43 = smul.u32 64, %s42
      %s45 = ssub.s32 512, %s43
      %46 = vsyncadd [#allocation6], %s45
      %p47 = scmp.ne.s32.totalorder 0, %s43
      %s48 = smul.addr %s41, 64
      %s49 = scalar_lea.hbm %s1, %s48
      %s50 = smul.u32 4, %s42
      %s51 = sshll.u32 [#allocation5], 4
      %s52 = int_to_ptr.vmem [resolvable:$true] %s51
      %s53 = sshll.u32 %s50, 4
      %57 = dma.hbm_to_vmem [thread:$0]  (%p47), %s49, %s53, %s52, [#allocation6], 64, 64, 4
    $region9: #{tpu_custom_call.1} parent=1 // pred_fallthru
      _
    // Predicated region
    $region10: #{tpu_custom_call.1} parent=1 // pred_check
      _
    $region11: #{tpu_custom_call.1} parent=1 // pred_check_branch
      %59 = sbr.rel (0) target = $region13
    $region12: #{tpu_custom_call.1} parent=1 // pred_region
      %s60 = sadd.s32 0, 0
      %p61 = scmp.lt.s32.totalorder %s60, 0
      %s62 = scalar_select %p61, %s60, 0
      %s63 = smul.u32 8, %s62
      %s64 = ssub.s32 1, %s63
      %s65 = smul.u32 64, %s64
      %s67 = ssub.s32 512, %s65
      %68 = vsyncadd [#allocation6], %s67
      %p69 = scmp.ne.s32.totalorder 0, %s65
      %s70 = smul.addr %s63, 64
      %s71 = scalar_lea.hbm %s2, %s70
      %s72 = smul.u32 4, %s64
      %s73 = sshll.u32 [#allocation7], 4
      %s74 = int_to_ptr.vmem [resolvable:$true] %s73
      %s75 = sshll.u32 %s72, 4
      %79 = dma.hbm_to_vmem [thread:$0]  (%p69), %s71, %s75, %s74, [#allocation6], 64, 64, 4
    $region13: #{tpu_custom_call.1} parent=1 // pred_fallthru
      _
    // Predicated region
    $region14: #{tpu_custom_call.1} parent=1 // pred_check
      _
    $region15: #{tpu_custom_call.1} parent=1 // pred_check_branch
      %81 = sbr.rel (0) target = $region17
    $region16: #{tpu_custom_call.1} parent=1 // pred_region
      %82 = dma.done [#allocation3], 512
    $region17: #{tpu_custom_call.1} parent=1 // pred_fallthru
      _
    // Predicated region
    $region18: #{tpu_custom_call.1} parent=1 // pred_check
      _
    $region19: #{tpu_custom_call.1} parent=1 // pred_check_branch
      %84 = sbr.rel (0) target = $region21
    $region20: #{tpu_custom_call.1} parent=1 // pred_region
      %85 = dma.done [#allocation6], 512
    $region21: #{tpu_custom_call.1} parent=1 // pred_fallthru
      _
    // Predicated region
    $region22: #{tpu_custom_call.1} parent=1 // pred_check
      _
    $region23: #{tpu_custom_call.1} parent=1 // pred_check_branch
      %87 = sbr.rel (0) target = $region25
    $region24: #{tpu_custom_call.1} parent=1 // pred_region
      %88 = dma.done [#allocation6], 512
    $region25: #{tpu_custom_call.1} parent=1 // pred_fallthru
      _
    %s89 = sadd.s32 0, 0
    %p90 = scmp.lt.s32.totalorder %s89, 0
    %s91 = scalar_select %p90, %s89, 0
    %s92 = smul.u32 8, %s91
    %s93 = ssub.s32 1, %s92
    %s94 = smul.u32 64, %s93
    %s95 = sadd.s32 0, 0
    %p96 = scmp.lt.s32.totalorder %s95, 0
    %s97 = scalar_select %p96, %s95, 0
    %s98 = smul.u32 8, %s97
    %s99 = ssub.s32 1, %s98
    %s100 = smul.u32 64, %s99
    %s101 = sadd.s32 0, 0
    %p102 = scmp.lt.s32.totalorder %s101, 0
    %s103 = scalar_select %p102, %s101, 0
    %s104 = smul.u32 8, %s103
    %s105 = ssub.s32 1, %s104
    %s106 = smul.u32 64, %s105
    %p107 = scmp.eq.s32.totalorder 0, 0
    // Predicated region
    $region26: #{tpu_custom_call.1} parent=1 // pred_check
      %p108 = pneg %p107
    $region27: #{tpu_custom_call.1} parent=1 // pred_check_branch
      %110 = sbr.rel (%p108) target = $region29
    $region28: #{tpu_custom_call.1} parent=1 // pred_region
      %111 = vst [vmem:[#allocation8] sm:$0xff] 0.0
      %112 = vst [vmem:[#allocation8 + $0x8] sm:$0xff] 0.0
      %113 = vst [vmem:[#allocation8 + $0x10] sm:$0xff] 0.0
      %114 = vst [vmem:[#allocation8 + $0x18] sm:$0xff] 0.0
      %115 = vst [vmem:[#allocation9] sm:$0xff] 0.0
      %116 = vst [vmem:[#allocation9 + $0x8] sm:$0xff] 0.0
      %117 = vst [vmem:[#allocation9 + $0x10] sm:$0xff] 0.0
      %118 = vst [vmem:[#allocation9 + $0x18] sm:$0xff] 0.0
    $region29: #{tpu_custom_call.1} parent=1 // pred_fallthru
      _
    %v119 = vld [vmem:[#allocation2] sm:$0xff]
    %v120 = vld [vmem:[#allocation2 + $0x8] sm:$0xff]
    %v121 = vld [vmem:[#allocation2 + $0x10] sm:$0xff]
    %v122 = vld [vmem:[#allocation2 + $0x18] sm:$0xff]
    %v123 = vld [vmem:[#allocation5] sm:$0xff]
    %v124 = vld [vmem:[#allocation5 + $0x8] sm:$0xff]
    %v125 = vld [vmem:[#allocation5 + $0x10] sm:$0xff]
    %v126 = vld [vmem:[#allocation5 + $0x18] sm:$0xff]
    %v127 = vld [vmem:[#allocation7] sm:$0xff]
    %v128 = vld [vmem:[#allocation7 + $0x8] sm:$0xff]
    %v129 = vld [vmem:[#allocation7 + $0x10] sm:$0xff]
    %v130 = vld [vmem:[#allocation7 + $0x18] sm:$0xff]
    %v131 = vsub.f32 %v119, %v123
    %v132 = vsub.f32 %v120, %v124
    %v133 = vsub.f32 %v121, %v125
    %v134 = vsub.f32 %v122, %v126
    %v135 = vand.u32 2147483647, %v131
    %v136 = vand.u32 2147483647, %v132
    %v137 = vand.u32 2147483647, %v133
    %v138 = vand.u32 2147483647, %v134
    %s139 = sadd.s32 0, 0
    %s140 = sadd.s32 %s139, 1
    %s141 = smul.u32 %s140, 32
    %p142 = scmp.le.s32.totalorder %s141, 4
    // Predicated region
    $region30: #{tpu_custom_call.1} parent=1 // pred_check
      %p143 = pneg %p142
    $region31: #{tpu_custom_call.1} parent=1 // pred_check_branch
      %145 = sbr.rel (%p143) target = $region33
    $region32: #{tpu_custom_call.1} parent=1 // pred_region
      %v146 = vld [vmem:[#allocation8] sm:$0xff]
      %v147 = vld [vmem:[#allocation8 + $0x8] sm:$0xff]
      %v148 = vld [vmem:[#allocation8 + $0x10] sm:$0xff]
      %v149 = vld [vmem:[#allocation8 + $0x18] sm:$0xff]
      %v150 = vmul.f32 %v135, %v127
      %v151 = vmul.f32 %v136, %v128
      %v152 = vmul.f32 %v137, %v129
      %v153 = vmul.f32 %v138, %v130
      %v154 = vadd.f32 %v150, 0.0
      %v155 = vadd.f32 %v151, 0.0
      %v156 = vadd.f32 %v152, 0.0
      %v157 = vadd.f32 %v153, 0.0
      %v158 = vadd.f32 %v146, %v154
      %v159 = vadd.f32 %v147, %v155
      %v160 = vadd.f32 %v148, %v156
      %v161 = vadd.f32 %v149, %v157
      %162 = vst [vmem:[#allocation8] sm:$0xff] %v158
      %163 = vst [vmem:[#allocation8 + $0x8] sm:$0xff] %v159
      %164 = vst [vmem:[#allocation8 + $0x10] sm:$0xff] %v160
      %165 = vst [vmem:[#allocation8 + $0x18] sm:$0xff] %v161
      %v166 = vld [vmem:[#allocation9] sm:$0xff]
      %v167 = vld [vmem:[#allocation9 + $0x8] sm:$0xff]
      %v168 = vld [vmem:[#allocation9 + $0x10] sm:$0xff]
      %v169 = vld [vmem:[#allocation9 + $0x18] sm:$0xff]
      %v170 = vadd.f32 %v127, 0.0
      %v171 = vadd.f32 %v128, 0.0
      %v172 = vadd.f32 %v129, 0.0
      %v173 = vadd.f32 %v130, 0.0
      %v174 = vadd.f32 %v166, %v170
      %v175 = vadd.f32 %v167, %v171
      %v176 = vadd.f32 %v168, %v172
      %v177 = vadd.f32 %v169, %v173
      %178 = vst [vmem:[#allocation9] sm:$0xff] %v174
      %179 = vst [vmem:[#allocation9 + $0x8] sm:$0xff] %v175
      %180 = vst [vmem:[#allocation9 + $0x10] sm:$0xff] %v176
      %181 = vst [vmem:[#allocation9 + $0x18] sm:$0xff] %v177
    $region33: #{tpu_custom_call.1} parent=1 // pred_fallthru
      _
    %p182 = scmp.gt.s32.totalorder %s141, 4
    // Predicated region
    $region34: #{tpu_custom_call.1} parent=1 // pred_check
      %p183 = pneg %p182
    $region35: #{tpu_custom_call.1} parent=1 // pred_check_branch
      %185 = sbr.rel (%p183) target = $region37
    $region36: #{tpu_custom_call.1} parent=1 // pred_region
      %s186 = smul.u32 %s139, 32
      %v187 = vlaneseq
      %v188 = vshrl.u32 %v187, 7
      %v189 = vadd.s32 %v188, 8
      %v190 = vadd.s32 %v188, 16
      %v191 = vadd.s32 %v188, 24
      %v192 = vstv %s186
      %v193 = vadd.s32 %v192, %v188
      %v194 = vadd.s32 %v192, %v189
      %v195 = vadd.s32 %v192, %v190
      %v196 = vadd.s32 %v192, %v191
      %vm197 = vcmp.lt.s32.totalorder %v193, 4
      %vm198 = vcmp.lt.s32.totalorder %v194, 4
      %vm199 = vcmp.lt.s32.totalorder %v195, 4
      %vm200 = vcmp.lt.s32.totalorder %v196, 4
      %v201 = vsel %vm197, %v135, 0.0
      %v202 = vsel %vm198, %v136, 0.0
      %v203 = vsel %vm199, %v137, 0.0
      %v204 = vsel %vm200, %v138, 0.0
      %v205 = vsel %vm197, %v127, 0.0
      %v206 = vsel %vm198, %v128, 0.0
      %v207 = vsel %vm199, %v129, 0.0
      %v208 = vsel %vm200, %v130, 0.0
      %v209 = vld [vmem:[#allocation8] sm:$0xff]
      %v210 = vld [vmem:[#allocation8 + $0x8] sm:$0xff]
      %v211 = vld [vmem:[#allocation8 + $0x10] sm:$0xff]
      %v212 = vld [vmem:[#allocation8 + $0x18] sm:$0xff]
      %v213 = vmul.f32 %v201, %v205
      %v214 = vmul.f32 %v202, %v206
      %v215 = vmul.f32 %v203, %v207
      %v216 = vmul.f32 %v204, %v208
      %v217 = vadd.f32 %v213, 0.0
      %v218 = vadd.f32 %v214, 0.0
      %v219 = vadd.f32 %v215, 0.0
      %v220 = vadd.f32 %v216, 0.0
      %v221 = vadd.f32 %v209, %v217
      %v222 = vadd.f32 %v210, %v218
      %v223 = vadd.f32 %v211, %v219
      %v224 = vadd.f32 %v212, %v220
      %225 = vst [vmem:[#allocation8] sm:$0xff] %v221
      %226 = vst [vmem:[#allocation8 + $0x8] sm:$0xff] %v222
      %227 = vst [vmem:[#allocation8 + $0x10] sm:$0xff] %v223
      %228 = vst [vmem:[#allocation8 + $0x18] sm:$0xff] %v224
      %v229 = vld [vmem:[#allocation9] sm:$0xff]
      %v230 = vld [vmem:[#allocation9 + $0x8] sm:$0xff]
      %v231 = vld [vmem:[#allocation9 + $0x10] sm:$0xff]
      %v232 = vld [vmem:[#allocation9 + $0x18] sm:$0xff]
      %v233 = vadd.f32 %v205, 0.0
      %v234 = vadd.f32 %v206, 0.0
      %v235 = vadd.f32 %v207, 0.0
      %v236 = vadd.f32 %v208, 0.0
      %v237 = vadd.f32 %v229, %v233
      %v238 = vadd.f32 %v230, %v234
      %v239 = vadd.f32 %v231, %v235
      %v240 = vadd.f32 %v232, %v236
      %241 = vst [vmem:[#allocation9] sm:$0xff] %v237
      %242 = vst [vmem:[#allocation9 + $0x8] sm:$0xff] %v238
      %243 = vst [vmem:[#allocation9 + $0x10] sm:$0xff] %v239
      %244 = vst [vmem:[#allocation9 + $0x18] sm:$0xff] %v240
    $region37: #{tpu_custom_call.1} parent=1 // pred_fallthru
      _
    // Predicated region
    $region38: #{tpu_custom_call.1} parent=1 // pred_check
      _
    $region39: #{tpu_custom_call.1} parent=1 // pred_check_branch
      %246 = sbr.rel (0) target = $region41
    $region40: #{tpu_custom_call.1} parent=1 // pred_region
      %s248 = ssub.s32 512, 512
      %249 = vsyncadd [#allocation4], %s248
      %s250 = sshll.u32 [#allocation8], 4
      %s251 = int_to_ptr.vmem [resolvable:$true] %s250
      %256 = dma.vmem_to_hbm [thread:$0]  %s251, 512, %s3, [#allocation4], 128, 128, 8
    $region41: #{tpu_custom_call.1} parent=1 // pred_fallthru
      _
    // Predicated region
    $region42: #{tpu_custom_call.1} parent=1 // pred_check
      _
    $region43: #{tpu_custom_call.1} parent=1 // pred_check_branch
      %258 = sbr.rel (0) target = $region45
    $region44: #{tpu_custom_call.1} parent=1 // pred_region
      %s260 = ssub.s32 512, 512
      %261 = vsyncadd [#allocation10], %s260
      %s262 = sshll.u32 [#allocation9], 4
      %s263 = int_to_ptr.vmem [resolvable:$true] %s262
      %268 = dma.vmem_to_hbm [thread:$0]  %s263, 512, %s4, [#allocation10], 128, 128, 8
    $region45: #{tpu_custom_call.1} parent=1 // pred_fallthru
      _
    // Predicated region
    $region46: #{tpu_custom_call.1} parent=1 // pred_check
      _
    $region47: #{tpu_custom_call.1} parent=1 // pred_check_branch
      %270 = sbr.rel (0) target = $region49
    $region48: #{tpu_custom_call.1} parent=1 // pred_region
      %271 = dma.done [#allocation4], 512
    $region49: #{tpu_custom_call.1} parent=1 // pred_fallthru
      _
    // Predicated region
    $region50: #{tpu_custom_call.1} parent=1 // pred_check
      _
    $region51: #{tpu_custom_call.1} parent=1 // pred_check_branch
      %273 = sbr.rel (0) target = $region53
    $region52: #{tpu_custom_call.1} parent=1 // pred_region
      %274 = dma.done [#allocation10], 512
    $region53: #{tpu_custom_call.1} parent=1 // pred_fallthru
      _
    %275 = vsyncpa [#allocation3], 1
    %276 = vsyncpa [#allocation6], 1
    %277 = vsyncpa [#allocation4], 1
    %278 = vsyncpa [#allocation10], 1

</llo_original>
